<compile_context>
chip_gen: v7x
topology: tpu7x:2x2x1
jax: 0.10.0
libtpu: 0.0.40
codegen_flags: <defaults>
</compile_context>

<pallas_src>
import jax
import jax.numpy as jnp
from jax.experimental import pallas as pl
from jax.experimental.pallas import tpu as pltpu

LANE = 128


def _round_up(x, m):
    return (x + m - 1) // m * m


def _make_kernel(n_node, np_cols, hidden, k4, b_blk):
    """Build the kernel closed over the static dims of the problem."""

    def kernel(x_ref, mask_ref, wqkv_ref, bqkv_ref, wo_ref, bo_ref,
               out_ref, att_ref, kpad_ref):
        # ---- fused V/Q/K projection for every row of the batch block -------
        # x_ref: (b_blk*N, din), wqkv_ref: (din, FP) -> single lane-dense matmul
        h = jnp.dot(x_ref[...], wqkv_ref[...],
                    preferred_element_type=jnp.float32)
        h = jnp.maximum(h + bqkv_ref[...], 0.0)            # (b_blk*N, FP)

        v = h[:, :hidden]                                  # (b_blk*N, hidden)
        q = h[:, hidden:hidden + k4]                       # (b_blk*N, k4)
        k = h[:, hidden + k4:hidden + 2 * k4]              # (b_blk*N, k4)

        # Padded-K scratch: rows [n_node:] stay zero, so q @ kpad^T directly
        # emits a lane-dense (N, 128) score/attention matrix.
        kpad_ref[...] = jnp.zeros_like(kpad_ref)
        col_valid = (jax.lax.broadcasted_iota(jnp.int32, (n_node, np_cols), 1)
                     < n_node)

        out_rows = []
        for bi in range(b_blk):                  # static, fully unrolled
            r0 = bi * n_node
            q_b = q[r0:r0 + n_node, :]
            k_b = k[r0:r0 + n_node, :]
            v_b = v[r0:r0 + n_node, :]

            kpad_ref[0:n_node, :] = k_b
            # q @ k^T (contract the feature dim) -> (N, 128); the implicit
            # transpose of the (128, k4) operand is negligible at this size.
            scores = jax.lax.dot_general(
                q_b, kpad_ref[...], (((1,), (1,)), ((), ())),
                preferred_element_type=jnp.float32)

            m_b = mask_ref[bi]                   # (N, 128); padded cols == 0
            value = jnp.where(m_b != 0.0, scores, -1000.0)
            value = value - jnp.max(value, axis=-1, keepdims=True)
            e = jnp.where(col_valid, jnp.exp(value), 0.0)   # zero padded cols
            inv = pl.reciprocal(jnp.sum(e, axis=-1, keepdims=True), approx=True)
            att = e * inv                        # padded columns exactly 0
            att_ref[bi] = att                    # lane-dense (N, 128) store

            out_rows.append(jnp.dot(att[:, :n_node], v_b,
                                    preferred_element_type=jnp.float32))

        oh = out_rows[0] if b_blk == 1 else jnp.concatenate(out_rows, axis=0)
        # Output projection for the whole block at once; W_out is padded to
        # 128 output lanes so the store is a full-width vst.
        out_ref[...] = jnp.maximum(
            jnp.dot(oh, wo_ref[...], preferred_element_type=jnp.float32)
            + bo_ref[...], 0.0)

    return kernel


def att_model_forward(x, mask, params):
    B, N, din = x.shape
    hidden = params["wv"].shape[1]
    k4 = params["wq"].shape[1]
    dout = params["wo"].shape[1]

    NP = _round_up(N, LANE)          # lane-dense attention columns
    F = hidden + 2 * k4              # fused projection width
    FP = _round_up(F, LANE)
    OP = _round_up(dout, LANE)       # lane-dense output columns

    # Fused [v | q | k] projection weight/bias, zero-padded to 128-lane multiple.
    w_qkv = jnp.concatenate([params["wv"], params["wq"], params["wk"]], axis=1)
    w_qkv = jnp.pad(w_qkv, ((0, 0), (0, FP - F)))
    b_qkv = jnp.pad(jnp.concatenate([params["bv"], params["bq"], params["bk"]]),
                    (0, FP - F)).reshape(1, FP)
    w_o = jnp.pad(params["wo"], ((0, 0), (0, OP - dout)))
    b_o = jnp.pad(params["bo"], (0, OP - dout)).reshape(1, OP)

    # Flatten batch*node rows for the projections; pad mask lanes to 128.
    x2 = x.reshape(B * N, din)
    mask_p = jnp.pad(mask, ((0, 0), (0, 0), (0, NP - N)))

    # Batch blocking: at most 2 grid steps (negligible per-step overhead)
    # while still giving v7x's two TensorCores independent parallel blocks.
    n_blocks = 2 if (B >= 2 and B % 2 == 0 and ((B // 2) * N) % 8 == 0) else 1
    b_blk = B // n_blocks

    kernel = _make_kernel(N, NP, hidden, k4, b_blk)

    out_pad, att_pad = pl.pallas_call(
        kernel,
        out_shape=(
            jax.ShapeDtypeStruct((B * N, OP), jnp.float32),
            jax.ShapeDtypeStruct((B, N, NP), jnp.float32),
        ),
        grid_spec=pltpu.PrefetchScalarGridSpec(
            num_scalar_prefetch=0,
            grid=(n_blocks,),
            in_specs=[
                pl.BlockSpec((b_blk * N, din), lambda b: (b, 0)),    # x rows
                pl.BlockSpec((b_blk, N, NP), lambda b: (b, 0, 0)),   # mask
                pl.BlockSpec((din, FP), lambda b: (0, 0)),           # W_qkv
                pl.BlockSpec((1, FP), lambda b: (0, 0)),             # b_qkv
                pl.BlockSpec((hidden, OP), lambda b: (0, 0)),        # W_out
                pl.BlockSpec((1, OP), lambda b: (0, 0)),             # b_out
            ],
            out_specs=[
                pl.BlockSpec((b_blk * N, OP), lambda b: (b, 0)),     # out
                pl.BlockSpec((b_blk, N, NP), lambda b: (b, 0, 0)),   # att
            ],
            scratch_shapes=[pltpu.VMEM((NP, k4), jnp.float32)],      # padded K
        ),
        compiler_params=pltpu.CompilerParams(
            dimension_semantics=("parallel",),
            vmem_limit_bytes=32 * 1024 * 1024),
    )(x2, mask_p, w_qkv, b_qkv, w_o, b_o)

    out = out_pad[:, :dout].reshape(B, N, dout)
    att = att_pad[:, :, :N]
    return out, att


def reference_forward(x, mask, params):
    """Pure-JAX reference mirroring the PyTorch forward."""
    v = jax.nn.relu(x @ params["wv"] + params["bv"])
    q = jax.nn.relu(x @ params["wq"] + params["bq"])
    k = jax.nn.relu(x @ params["wk"] + params["bk"])
    bmm = jnp.einsum("bnf,bmf->bnm", q, k)
    value = bmm * mask - 1000.0 * (1.0 - mask)
    att = jax.nn.softmax(value, axis=2)
    out = jax.nn.relu(jnp.einsum("bnm,bmh->bnh", att, v) @ params["wo"]
                      + params["bo"])
    return out, att


def init_params(key, n_node, din, hidden_dim, dout, mask_dim):
    ks = jax.random.split(key, 12)
    scale = 0.1
    params = {
        # fcv: Linear(din, hidden_dim)
        "wv": scale * jax.random.normal(ks[0], (din, hidden_dim), jnp.float32),
        "bv": scale * jax.random.normal(ks[1], (hidden_dim,), jnp.float32),
        # fcq: Linear(din, n_node * 4)
        "wq": scale * jax.random.normal(ks[2], (din, n_node * 4), jnp.float32),
        "bq": scale * jax.random.normal(ks[3], (n_node * 4,), jnp.float32),
        # fck: Linear(din, n_node * 4)
        "wk": scale * jax.random.normal(ks[4], (din, n_node * 4), jnp.float32),
        "bk": scale * jax.random.normal(ks[5], (n_node * 4,), jnp.float32),
        # fcout: Linear(hidden_dim, dout)
        "wo": scale * jax.random.normal(ks[6], (hidden_dim, dout), jnp.float32),
        "bo": scale * jax.random.normal(ks[7], (dout,), jnp.float32),
        # fca: Linear(mask_dim, n_node) -- present in __init__ but unused in forward
        "wa": scale * jax.random.normal(ks[8], (mask_dim, n_node), jnp.float32),
        "ba": scale * jax.random.normal(ks[9], (n_node,), jnp.float32),
    }
    return params


if __name__ == "__main__":
    B = 2
    n_node = 8
    din = 32
    hidden_dim = 32
    dout = 16
    mask_dim = 10   # fca is unused in forward

    key = jax.random.PRNGKey(0)
    kp, kx, km = jax.random.split(key, 3)

    params = init_params(kp, n_node, din, hidden_dim, dout, mask_dim)

    x = jax.random.normal(kx, (B, n_node, din), jnp.float32)
    mask = (jax.random.uniform(km, (B, n_node, n_node)) > 0.3).astype(jnp.float32)
    # ensure self-connection so every row has at least one unmasked entry
    mask = jnp.maximum(mask, jnp.eye(n_node, dtype=jnp.float32)[None])

    out, att = att_model_forward(x, mask, params)
    jax.block_until_ready((out, att))

    out_ref, att_ref = reference_forward(x, mask, params)
    assert jnp.allclose(out, out_ref, atol=2e-2, rtol=2e-2), "out mismatch"
    assert jnp.allclose(att, att_ref, atol=2e-2, rtol=2e-2), "att mismatch"

    print("KERNEL_OK")
</pallas_src>

<mosaic_0001>
module attributes {stable_mosaic.version = 11 : i64} {
  func.func @kernel(%arg0: i32, %arg1: memref<8x32xf32, #tpu.memory_space<vmem>>, %arg2: memref<1x8x128xf32, #tpu.memory_space<vmem>>, %arg3: memref<32x128xf32, #tpu.memory_space<vmem>>, %arg4: memref<1x128xf32, #tpu.memory_space<vmem>>, %arg5: memref<32x128xf32, #tpu.memory_space<vmem>>, %arg6: memref<1x128xf32, #tpu.memory_space<vmem>>, %arg7: memref<8x128xf32, #tpu.memory_space<vmem>>, %arg8: memref<1x8x128xf32, #tpu.memory_space<vmem>>, %arg9: memref<128x32xf32, #tpu.memory_space<vmem>>) attributes {dimension_semantics = [#tpu.dimension_semantics<parallel>], iteration_bounds = array<i64: 2>, scalar_prefetch = 0 : i64, scratch_operands = 1 : i64, tpu.core_type = #tpu.core_type<tc>, window_params = [{transform_indices = @transform_0, window_bounds = array<i64: 8, 32>}, {transform_indices = @transform_1, window_bounds = array<i64: 1, 8, 128>}, {pipeline_mode = #tpu.pipeline_mode<synchronous>, transform_indices = @transform_2, window_bounds = array<i64: 32, 128>}, {pipeline_mode = #tpu.pipeline_mode<synchronous>, transform_indices = @transform_3, window_bounds = array<i64: 1, 128>}, {pipeline_mode = #tpu.pipeline_mode<synchronous>, transform_indices = @transform_4, window_bounds = array<i64: 32, 128>}, {pipeline_mode = #tpu.pipeline_mode<synchronous>, transform_indices = @transform_5, window_bounds = array<i64: 1, 128>}, {transform_indices = @transform_6, window_bounds = array<i64: 8, 128>}, {transform_indices = @transform_7, window_bounds = array<i64: 1, 8, 128>}]} {
    %c0 = arith.constant 0 : index
    %c0_0 = arith.constant 0 : index
    %0 = vector.load %arg1[%c0, %c0_0] : memref<8x32xf32, #tpu.memory_space<vmem>>, vector<8x32xf32>
    %c0_1 = arith.constant 0 : index
    %c0_2 = arith.constant 0 : index
    %1 = vector.load %arg3[%c0_1, %c0_2] : memref<32x128xf32, #tpu.memory_space<vmem>>, vector<32x128xf32>
    %cst = arith.constant dense<0.000000e+00> : vector<8x128xf32>
    %2 = tpu.matmul %0, %1, %cst {dimension_numbers = #tpu.dot_dimension_numbers<[1], [0], [0], [1], [0, 0, 1, 1], [], []>} : vector<8x32xf32>, vector<32x128xf32>, vector<8x128xf32> -> vector<8x128xf32>
    %c0_3 = arith.constant 0 : index
    %c0_4 = arith.constant 0 : index
    %3 = vector.load %arg4[%c0_3, %c0_4] : memref<1x128xf32, #tpu.memory_space<vmem>>, vector<1x128xf32>
    %4 = vector.broadcast %3 : vector<1x128xf32> to vector<8x128xf32>
    %5 = arith.addf %2, %4 : vector<8x128xf32>
    %cst_5 = arith.constant 0.000000e+00 : f32
    %6 = vector.broadcast %cst_5 : f32 to vector<8x128xf32>
    %7 = arith.maximumf %5, %6 : vector<8x128xf32>
    %8 = vector.extract_strided_slice %7 {offsets = [0, 0], sizes = [8, 32], strides = [1, 1]} : vector<8x128xf32> to vector<8x32xf32>
    %9 = vector.extract_strided_slice %7 {offsets = [0, 32], sizes = [8, 32], strides = [1, 1]} : vector<8x128xf32> to vector<8x32xf32>
    %10 = vector.extract_strided_slice %7 {offsets = [0, 64], sizes = [8, 32], strides = [1, 1]} : vector<8x128xf32> to vector<8x32xf32>
    %cst_6 = arith.constant 0.000000e+00 : f32
    %11 = vector.broadcast %cst_6 : f32 to vector<128x32xf32>
    %c0_7 = arith.constant 0 : index
    %c0_8 = arith.constant 0 : index
    %12 = vector.load %arg9[%c0_7, %c0_8] : memref<128x32xf32, #tpu.memory_space<vmem>>, vector<128x32xf32>
    tpu.vector_store %arg9[%c0_7, %c0_8], %11 {strides = array<i32>} : memref<128x32xf32, #tpu.memory_space<vmem>>, vector<128x32xf32>,
    %13 = tpu.iota {dimensions = array<i32: 1>} : vector<8x128xi32>
    %c8_i32 = arith.constant 8 : i32
    %14 = vector.broadcast %c8_i32 : i32 to vector<8x128xi32>
    %15 = arith.cmpi slt, %13, %14 : vector<8x128xi32>
    %c0_9 = arith.constant 0 : index
    %c0_10 = arith.constant 0 : index
    %16 = vector.load %arg9[%c0_9, %c0_10] : memref<128x32xf32, #tpu.memory_space<vmem>>, vector<8x32xf32>
    tpu.vector_store %arg9[%c0_9, %c0_10], %10 {strides = array<i32>} : memref<128x32xf32, #tpu.memory_space<vmem>>, vector<8x32xf32>,
    %c0_11 = arith.constant 0 : index
    %c0_12 = arith.constant 0 : index
    %17 = vector.load %arg9[%c0_11, %c0_12] : memref<128x32xf32, #tpu.memory_space<vmem>>, vector<128x32xf32>
    %cst_13 = arith.constant dense<0.000000e+00> : vector<8x128xf32>
    %18 = tpu.matmul %9, %17, %cst_13 {dimension_numbers = #tpu.dot_dimension_numbers<[1], [1], [0], [0], [0, 0, 1, 0], [], []>} : vector<8x32xf32>, vector<128x32xf32>, vector<8x128xf32> -> vector<8x128xf32>
    %c0_14 = arith.constant 0 : index
    %c0_15 = arith.constant 0 : index
    %c0_16 = arith.constant 0 : index
    %19 = vector.load %arg2[%c0_14, %c0_15, %c0_16] : memref<1x8x128xf32, #tpu.memory_space<vmem>>, vector<1x8x128xf32>
    %20 = vector.shape_cast %19 : vector<1x8x128xf32> to vector<8x128xf32>
    %cst_17 = arith.constant 0.000000e+00 : f32
    %21 = vector.broadcast %cst_17 : f32 to vector<8x128xf32>
    %22 = arith.cmpf one, %20, %21 : vector<8x128xf32>
    %cst_18 = arith.constant -1.000000e+03 : f32
    %23 = vector.broadcast %cst_18 : f32 to vector<8x128xf32>
    %24 = arith.select %22, %18, %23 : vector<8x128xi1>, vector<8x128xf32>
    %cst_19 = arith.constant dense<0xFF800000> : vector<8xf32>
    %25 = vector.multi_reduction <maximumf>, %24, %cst_19 [1] : vector<8x128xf32> to vector<8xf32>
    %26 = vector.shape_cast %25 : vector<8xf32> to vector<8x1xf32>
    %27 = vector.broadcast %26 : vector<8x1xf32> to vector<8x128xf32>
    %28 = arith.subf %24, %27 : vector<8x128xf32>
    %29 = math.exp %28 : vector<8x128xf32>
    %cst_20 = arith.constant 0.000000e+00 : f32
    %30 = vector.broadcast %cst_20 : f32 to vector<8x128xf32>
    %31 = arith.select %15, %29, %30 : vector<8x128xi1>, vector<8x128xf32>
    %cst_21 = arith.constant dense<0.000000e+00> : vector<8xf32>
    %32 = vector.multi_reduction <add>, %31, %cst_21 [1] : vector<8x128xf32> to vector<8xf32>
    %33 = vector.shape_cast %32 : vector<8xf32> to vector<8x1xf32>
    %34 = tpu.reciprocal %33 {approx = true} : vector<8x1xf32> -> vector<8x1xf32>
    %35 = vector.broadcast %34 : vector<8x1xf32> to vector<8x128xf32>
    %36 = arith.mulf %31, %35 : vector<8x128xf32>
    %c0_22 = arith.constant 0 : index
    %c0_23 = arith.constant 0 : index
    %c0_24 = arith.constant 0 : index
    %37 = vector.load %arg8[%c0_22, %c0_23, %c0_24] : memref<1x8x128xf32, #tpu.memory_space<vmem>>, vector<1x8x128xf32>
    %38 = vector.shape_cast %37 : vector<1x8x128xf32> to vector<8x128xf32>
    %39 = vector.shape_cast %36 : vector<8x128xf32> to vector<1x8x128xf32>
    tpu.vector_store %arg8[%c0_22, %c0_23, %c0_24], %39 {strides = array<i32>} : memref<1x8x128xf32, #tpu.memory_space<vmem>>, vector<1x8x128xf32>,
    %40 = vector.extract_strided_slice %36 {offsets = [0, 0], sizes = [8, 8], strides = [1, 1]} : vector<8x128xf32> to vector<8x8xf32>
    %cst_25 = arith.constant dense<0.000000e+00> : vector<8x32xf32>
    %41 = tpu.matmul %40, %8, %cst_25 {dimension_numbers = #tpu.dot_dimension_numbers<[1], [0], [0], [1], [0, 0, 1, 1], [], []>} : vector<8x8xf32>, vector<8x32xf32>, vector<8x32xf32> -> vector<8x32xf32>
    %c0_26 = arith.constant 0 : index
    %c0_27 = arith.constant 0 : index
    %42 = vector.load %arg5[%c0_26, %c0_27] : memref<32x128xf32, #tpu.memory_space<vmem>>, vector<32x128xf32>
    %cst_28 = arith.constant dense<0.000000e+00> : vector<8x128xf32>
    %43 = tpu.matmul %41, %42, %cst_28 {dimension_numbers = #tpu.dot_dimension_numbers<[1], [0], [0], [1], [0, 0, 1, 1], [], []>} : vector<8x32xf32>, vector<32x128xf32>, vector<8x128xf32> -> vector<8x128xf32>
    %c0_29 = arith.constant 0 : index
    %c0_30 = arith.constant 0 : index
    %44 = vector.load %arg6[%c0_29, %c0_30] : memref<1x128xf32, #tpu.memory_space<vmem>>, vector<1x128xf32>
    %45 = vector.broadcast %44 : vector<1x128xf32> to vector<8x128xf32>
    %46 = arith.addf %43, %45 : vector<8x128xf32>
    %cst_31 = arith.constant 0.000000e+00 : f32
    %47 = vector.broadcast %cst_31 : f32 to vector<8x128xf32>
    %48 = arith.maximumf %46, %47 : vector<8x128xf32>
    %c0_32 = arith.constant 0 : index
    %c0_33 = arith.constant 0 : index
    %49 = vector.load %arg7[%c0_32, %c0_33] : memref<8x128xf32, #tpu.memory_space<vmem>>, vector<8x128xf32>
    tpu.vector_store %arg7[%c0_32, %c0_33], %48 {strides = array<i32>} : memref<8x128xf32, #tpu.memory_space<vmem>>, vector<8x128xf32>,
    return
  }
  func.func @transform_0(%arg0: i32) -> (i32, i32) {
    %c0_i32 = arith.constant 0 : i32
    %c0_i32_0 = arith.constant 0 : i32
    return %arg0, %c0_i32 : i32, i32
  }
  func.func @transform_1(%arg0: i32) -> (i32, i32, i32) {
    %c0_i32 = arith.constant 0 : i32
    %c0_i32_0 = arith.constant 0 : i32
    %c0_i32_1 = arith.constant 0 : i32
    return %arg0, %c0_i32, %c0_i32_0 : i32, i32, i32
  }
  func.func @transform_2(%arg0: i32) -> (i32, i32) {
    %c0_i32 = arith.constant 0 : i32
    %c0_i32_0 = arith.constant 0 : i32
    %c0_i32_1 = arith.constant 0 : i32
    return %c0_i32, %c0_i32_0 : i32, i32
  }
  func.func @transform_3(%arg0: i32) -> (i32, i32) {
    %c0_i32 = arith.constant 0 : i32
    %c0_i32_0 = arith.constant 0 : i32
    %c0_i32_1 = arith.constant 0 : i32
    return %c0_i32, %c0_i32_0 : i32, i32
  }
  func.func @transform_4(%arg0: i32) -> (i32, i32) {
    %c0_i32 = arith.constant 0 : i32
    %c0_i32_0 = arith.constant 0 : i32
    %c0_i32_1 = arith.constant 0 : i32
    return %c0_i32, %c0_i32_0 : i32, i32
  }
  func.func @transform_5(%arg0: i32) -> (i32, i32) {
    %c0_i32 = arith.constant 0 : i32
    %c0_i32_0 = arith.constant 0 : i32
    %c0_i32_1 = arith.constant 0 : i32
    return %c0_i32, %c0_i32_0 : i32, i32
  }
  func.func @transform_6(%arg0: i32) -> (i32, i32) {
    %c0_i32 = arith.constant 0 : i32
    %c0_i32_0 = arith.constant 0 : i32
    return %arg0, %c0_i32 : i32, i32
  }
  func.func @transform_7(%arg0: i32) -> (i32, i32, i32) {
    %c0_i32 = arith.constant 0 : i32
    %c0_i32_0 = arith.constant 0 : i32
    %c0_i32_1 = arith.constant 0 : i32
    return %arg0, %c0_i32, %c0_i32_0 : i32, i32, i32
  }
}

</mosaic_0001>

<llo_original>
// kernel: tpu_custom_call.1
$region0: #{tpu_custom_call.1}
  #allocation0 [shape = 'u32[]', space=smem, size = 0x4, offset = 0x4, fixed_abs, tag = 'smem constant byte address 0x4 - core index']
  #allocation1 [shape = 'u32[144,128]{1,0:T(1,128)}', space=vmem, size = 0x12000, scoped, tag = 'internal scratch']
  #allocation2 [shape = 'f32[128,32]{1,0:T(8,128)}', space=vmem, size = 0x10000, scoped, tag = 'scratch operand']
  %s0 = inlined_call_operand.hbm [shape: f32[16,32], index: 0, kind: input, shape index: {}]
  %s1 = inlined_call_operand.hbm [shape: f32[2,8,128], index: 1, kind: input, shape index: {}]
  %s2 = inlined_call_operand.hbm [shape: f32[32,128], index: 2, kind: input, shape index: {}]
  %s3 = inlined_call_operand.vmem [shape: f32[1,128], index: 3, kind: input, shape index: {}]
  %s4 = inlined_call_operand.hbm [shape: f32[32,128], index: 4, kind: input, shape index: {}]
  %s5 = inlined_call_operand.vmem [shape: f32[1,128], index: 5, kind: input, shape index: {}]
  %s6 = inlined_call_operand.hbm [shape: f32[16,128], index: 6, kind: output, shape index: {0}]
  %s7 = inlined_call_operand.hbm [shape: f32[2,8,128], index: 7, kind: output, shape index: {1}]
  %8 = xla_tuple %s6, %s7
  %s9 = sld [smem:[#allocation0]]
  $region81: #{tpu_custom_call.1} parent=0
    _
  %s11 = ssub.s32 1, %s9
  %s12 = scalar_select 0, %s11, %s9
  $region1: #{tpu_custom_call.1} parent=0
    #allocation3 [shape = 'u8[8192]{0}', space=vmem, size = 0x2000, scoped, tag = 'input window, operand 0']
    #allocation4 [shape = 's32[2]{0}', space=sflag, size = 0x8, scoped, tag = 'scoped memory for tpu_custom_call.1']
    #allocation5 [shape = 's32[2]{0}', space=sflag, size = 0x8, scoped, tag = 'scoped memory for tpu_custom_call.1']
    #allocation6 [shape = 'u8[8192]{0}', space=vmem, size = 0x2000, scoped, tag = 'input window, operand 1']
    #allocation7 [shape = 's32[2]{0}', space=sflag, size = 0x8, scoped, tag = 'scoped memory for tpu_custom_call.1']
    #allocation8 [shape = 'u8[16384]{0}', space=vmem, size = 0x4000, scoped, tag = 'input window, operand 2, single buffered']
    #allocation9 [shape = 'u8[16384]{0}', space=vmem, size = 0x4000, scoped, tag = 'input window, operand 4, single buffered']
    #allocation10 [shape = 's32[1]{0}', space=sflag, size = 0x4, scoped, tag = 'scoped memory for tpu_custom_call.1']
    #allocation11 [shape = 'u8[8192]{0}', space=vmem, size = 0x2000, scoped, tag = 'output window, operand 0']
    #allocation12 [shape = 'u8[8192]{0}', space=vmem, size = 0x2000, scoped, tag = 'output window, operand 1']
    #allocation13 [shape = 's32[2]{0}', space=sflag, size = 0x8, scoped, tag = 'scoped memory for tpu_custom_call.1']
    %13 = vsyncpa [#allocation4], 0
    %s14 = scalar_lea.sflag [#allocation4], 1
    %15 = vsyncpa %s14, 0
    %16 = vsyncpa [#allocation7], 0
    %s17 = scalar_lea.sflag [#allocation7], 1
    %18 = vsyncpa %s17, 0
    %19 = vsyncpa [#allocation10], 0
    %20 = vsyncpa [#allocation5], 0
    %s21 = scalar_lea.sflag [#allocation5], 1
    %22 = vsyncpa %s21, 0
    %23 = vsyncpa [#allocation13], 0
    %s24 = scalar_lea.sflag [#allocation13], 1
    %25 = vsyncpa %s24, 0
    loop: start=0, step=1, limit=4
    $region2: #{tpu_custom_call.1} parent=1 // loop_pre_header
      _
    $region3: #{tpu_custom_call.1} parent=1 // loop_header
      %s27 = sphi 0, %s31
      %p28 = scmp.ge.s32.totalorder %s27, 4
      %s37 = sphi 0, %s39
      %s40 = sphi 0, %s37
      %s41 = sphi 0, %s40
      %s57 = sphi 0, %s41
      %s63 = sphi 0, %s65
      %s66 = sphi 0, %s63
      %s67 = sphi 0, %s66
      %s83 = sphi 0, %s67
      %s87 = sphi 0, %s87
      %s89 = sphi 0, %s87
      %s90 = sphi 0, %s89
      %s104 = sphi 0, %s90
      %s108 = sphi 0, %s108
      %s110 = sphi 0, %s108
      %s111 = sphi 0, %s110
      %s125 = sphi 0, %s111
      %s129 = sphi 0, %s129
      %s131 = sphi 0, %s129
      %s132 = sphi 0, %s131
      %s146 = sphi 0, %s132
      %s150 = sphi 0, %s150
      %s152 = sphi 0, %s150
      %s153 = sphi 0, %s152
      %s167 = sphi 0, %s153
      %s173 = sphi 0, %s175
      %s176 = sphi 0, %s173
      %s177 = sphi 0, %s176
      %s193 = sphi 0, %s177
      %s199 = sphi 0, %s201
      %s202 = sphi 0, %s199
      %s203 = sphi 0, %s202
      %s219 = sphi 0, %s203
    $region4: #{tpu_custom_call.1} parent=1 // loop_header_branch
      %30 = sbr.rel (%p28) target = $region8
    $region5: #{tpu_custom_call.1} parent=1 // loop_body
      %s32 = ssub.s32 %s27, 1
      %s33 = ssub.s32 %s27, 2
      %s34 = sadd.s32 %s27, 1
      %s35 = ssub.s32 %s27, %s34
      %p36 = scmp.eq.s32.totalorder %s35, 0
      %s38 = sadd.s32 %s37, 1
      %s39 = scalar_select %p36, %s37, %s38
      %p42 = pneg %p36
      %p43 = scmp.eq.s32.totalorder %s27, 1
      %p44 = por %p42, %p43
      %p45 = scmp.ne.s32.totalorder %s37, %s40
      %p46 = scmp.eq.s32.totalorder %s27, 0
      %p47 = por %p45, %p46
      %p48 = scmp.ne.s32.totalorder %s37, %s40
      %p49 = scmp.eq.s32.totalorder %s32, 1
      %p50 = por %p48, %p49
      %p51 = scmp.ne.s32.totalorder %s40, %s41
      %p52 = scmp.eq.s32.totalorder %s32, 0
      %p53 = por %p51, %p52
      %p54 = scmp.ne.s32.totalorder %s40, %s41
      %p55 = scmp.eq.s32.totalorder %s33, 1
      %p56 = por %p54, %p55
      %p58 = scmp.ne.s32.totalorder %s41, %s57
      %p59 = scmp.eq.s32.totalorder %s33, 0
      %p60 = por %p58, %p59
      %s61 = ssub.s32 %s27, %s34
      %p62 = scmp.eq.s32.totalorder %s61, 0
      %s64 = sadd.s32 %s63, 1
      %s65 = scalar_select %p62, %s63, %s64
      %p68 = pneg %p62
      %p69 = scmp.eq.s32.totalorder %s27, 1
      %p70 = por %p68, %p69
      %p71 = scmp.ne.s32.totalorder %s63, %s66
      %p72 = scmp.eq.s32.totalorder %s27, 0
      %p73 = por %p71, %p72
      %p74 = scmp.ne.s32.totalorder %s63, %s66
      %p75 = scmp.eq.s32.totalorder %s32, 1
      %p76 = por %p74, %p75
      %p77 = scmp.ne.s32.totalorder %s66, %s67
      %p78 = scmp.eq.s32.totalorder %s32, 0
      %p79 = por %p77, %p78
      %p80 = scmp.ne.s32.totalorder %s66, %s67
      %p81 = scmp.eq.s32.totalorder %s33, 1
      %p82 = por %p80, %p81
      %p84 = scmp.ne.s32.totalorder %s67, %s83
      %p85 = scmp.eq.s32.totalorder %s33, 0
      %p86 = por %p84, %p85
      %s88 = sadd.s32 %s87, 1
      %p91 = scmp.eq.s32.totalorder %s27, 1
      %p92 = scmp.ne.s32.totalorder %s87, %s89
      %p93 = scmp.eq.s32.totalorder %s27, 0
      %p94 = por %p92, %p93
      %p95 = scmp.ne.s32.totalorder %s87, %s89
      %p96 = scmp.eq.s32.totalorder %s32, 1
      %p97 = por %p95, %p96
      %p98 = scmp.ne.s32.totalorder %s89, %s90
      %p99 = scmp.eq.s32.totalorder %s32, 0
      %p100 = por %p98, %p99
      %p101 = scmp.ne.s32.totalorder %s89, %s90
      %p102 = scmp.eq.s32.totalorder %s33, 1
      %p103 = por %p101, %p102
      %p105 = scmp.ne.s32.totalorder %s90, %s104
      %p106 = scmp.eq.s32.totalorder %s33, 0
      %p107 = por %p105, %p106
      %s109 = sadd.s32 %s108, 1
      %p112 = scmp.eq.s32.totalorder %s27, 1
      %p113 = scmp.ne.s32.totalorder %s108, %s110
      %p114 = scmp.eq.s32.totalorder %s27, 0
      %p115 = por %p113, %p114
      %p116 = scmp.ne.s32.totalorder %s108, %s110
      %p117 = scmp.eq.s32.totalorder %s32, 1
      %p118 = por %p116, %p117
      %p119 = scmp.ne.s32.totalorder %s110, %s111
      %p120 = scmp.eq.s32.totalorder %s32, 0
      %p121 = por %p119, %p120
      %p122 = scmp.ne.s32.totalorder %s110, %s111
      %p123 = scmp.eq.s32.totalorder %s33, 1
      %p124 = por %p122, %p123
      %p126 = scmp.ne.s32.totalorder %s111, %s125
      %p127 = scmp.eq.s32.totalorder %s33, 0
      %p128 = por %p126, %p127
      %s130 = sadd.s32 %s129, 1
      %p133 = scmp.eq.s32.totalorder %s27, 1
      %p134 = scmp.ne.s32.totalorder %s129, %s131
      %p135 = scmp.eq.s32.totalorder %s27, 0
      %p136 = por %p134, %p135
      %p137 = scmp.ne.s32.totalorder %s129, %s131
      %p138 = scmp.eq.s32.totalorder %s32, 1
      %p139 = por %p137, %p138
      %p140 = scmp.ne.s32.totalorder %s131, %s132
      %p141 = scmp.eq.s32.totalorder %s32, 0
      %p142 = por %p140, %p141
      %p143 = scmp.ne.s32.totalorder %s131, %s132
      %p144 = scmp.eq.s32.totalorder %s33, 1
      %p145 = por %p143, %p144
      %p147 = scmp.ne.s32.totalorder %s132, %s146
      %p148 = scmp.eq.s32.totalorder %s33, 0
      %p149 = por %p147, %p148
      %s151 = sadd.s32 %s150, 1
      %p154 = scmp.eq.s32.totalorder %s27, 1
      %p155 = scmp.ne.s32.totalorder %s150, %s152
      %p156 = scmp.eq.s32.totalorder %s27, 0
      %p157 = por %p155, %p156
      %p158 = scmp.ne.s32.totalorder %s150, %s152
      %p159 = scmp.eq.s32.totalorder %s32, 1
      %p160 = por %p158, %p159
      %p161 = scmp.ne.s32.totalorder %s152, %s153
      %p162 = scmp.eq.s32.totalorder %s32, 0
      %p163 = por %p161, %p162
      %p164 = scmp.ne.s32.totalorder %s152, %s153
      %p165 = scmp.eq.s32.totalorder %s33, 1
      %p166 = por %p164, %p165
      %p168 = scmp.ne.s32.totalorder %s153, %s167
      %p169 = scmp.eq.s32.totalorder %s33, 0
      %p170 = por %p168, %p169
      %s171 = ssub.s32 %s27, %s34
      %p172 = scmp.eq.s32.totalorder %s171, 0
      %s174 = sadd.s32 %s173, 1
      %s175 = scalar_select %p172, %s173, %s174
      %p178 = pneg %p172
      %p179 = scmp.eq.s32.totalorder %s27, 1
      %p180 = por %p178, %p179
      %p181 = scmp.ne.s32.totalorder %s173, %s176
      %p182 = scmp.eq.s32.totalorder %s27, 0
      %p183 = por %p181, %p182
      %p184 = scmp.ne.s32.totalorder %s173, %s176
      %p185 = scmp.eq.s32.totalorder %s32, 1
      %p186 = por %p184, %p185
      %p187 = scmp.ne.s32.totalorder %s176, %s177
      %p188 = scmp.eq.s32.totalorder %s32, 0
      %p189 = por %p187, %p188
      %p190 = scmp.ne.s32.totalorder %s176, %s177
      %p191 = scmp.eq.s32.totalorder %s33, 1
      %p192 = por %p190, %p191
      %p194 = scmp.ne.s32.totalorder %s177, %s193
      %p195 = scmp.eq.s32.totalorder %s33, 0
      %p196 = por %p194, %p195
      %s197 = ssub.s32 %s27, %s34
      %p198 = scmp.eq.s32.totalorder %s197, 0
      %s200 = sadd.s32 %s199, 1
      %s201 = scalar_select %p198, %s199, %s200
      %p204 = pneg %p198
      %p205 = scmp.eq.s32.totalorder %s27, 1
      %p206 = por %p204, %p205
      %p207 = scmp.ne.s32.totalorder %s199, %s202
      %p208 = scmp.eq.s32.totalorder %s27, 0
      %p209 = por %p207, %p208
      %p210 = scmp.ne.s32.totalorder %s199, %s202
      %p211 = scmp.eq.s32.totalorder %s32, 1
      %p212 = por %p210, %p211
      %p213 = scmp.ne.s32.totalorder %s202, %s203
      %p214 = scmp.eq.s32.totalorder %s32, 0
      %p215 = por %p213, %p214
      %p216 = scmp.ne.s32.totalorder %s202, %s203
      %p217 = scmp.eq.s32.totalorder %s33, 1
      %p218 = por %p216, %p217
      %p220 = scmp.ne.s32.totalorder %s203, %s219
      %p221 = scmp.eq.s32.totalorder %s33, 0
      %p222 = por %p220, %p221
      %p223 = scmp.le.s32.totalorder 1, %s27
      %p224 = scmp.lt.s32.totalorder %s27, 3
      %p225 = pnand %p223, %p224
      %p226 = pneg %p225
      // Predicated region
      $region9: #{tpu_custom_call.1} parent=5 // pred_check
        _
      $region10: #{tpu_custom_call.1} parent=5 // pred_check_branch
        %228 = sbr.rel (%p225) target = $region12
      $region11: #{tpu_custom_call.1} parent=5 // pred_region
        %s229 = ssub.s32 %s27, 1
        // Predicated region
        $region13: #{tpu_custom_call.1} parent=11 // pred_check
          %p230 = pneg %p100
        $region14: #{tpu_custom_call.1} parent=11 // pred_check_branch
          %232 = sbr.rel (%p230) target = $region16
        $region15: #{tpu_custom_call.1} parent=11 // pred_region
          %s234 = ssub.s32 512, 512
          %235 = vsyncadd [#allocation7], %s234
          %s236 = sshll.u32 [#allocation8], 4
          %s237 = int_to_ptr.vmem [resolvable:$true] %s236
          %242 = dma.hbm_to_vmem [thread:$0]  %s2, 512, %s237, [#allocation7], 128, 128, 8
        $region16: #{tpu_custom_call.1} parent=11 // pred_fallthru
          _
        // Predicated region
        $region17: #{tpu_custom_call.1} parent=11 // pred_check
          %p243 = pneg %p121
        $region18: #{tpu_custom_call.1} parent=11 // pred_check_branch
          %245 = sbr.rel (%p243) target = $region20
        $region19: #{tpu_custom_call.1} parent=11 // pred_region
          _
        $region20: #{tpu_custom_call.1} parent=11 // pred_fallthru
          _
        // Predicated region
        $region21: #{tpu_custom_call.1} parent=11 // pred_check
          %p246 = pneg %p142
        $region22: #{tpu_custom_call.1} parent=11 // pred_check_branch
          %248 = sbr.rel (%p246) target = $region24
        $region23: #{tpu_custom_call.1} parent=11 // pred_region
          %s250 = ssub.s32 512, 512
          %251 = vsyncadd [#allocation10], %s250
          %s252 = sshll.u32 [#allocation9], 4
          %s253 = int_to_ptr.vmem [resolvable:$true] %s252
          %258 = dma.hbm_to_vmem [thread:$0]  %s4, 512, %s253, [#allocation10], 128, 128, 8
        $region24: #{tpu_custom_call.1} parent=11 // pred_fallthru
          _
        // Predicated region
        $region25: #{tpu_custom_call.1} parent=11 // pred_check
          %p259 = pneg %p163
        $region26: #{tpu_custom_call.1} parent=11 // pred_check_branch
          %261 = sbr.rel (%p259) target = $region28
        $region27: #{tpu_custom_call.1} parent=11 // pred_region
          _
        $region28: #{tpu_custom_call.1} parent=11 // pred_fallthru
          _
      $region12: #{tpu_custom_call.1} parent=5 // pred_fallthru
        _
      %p262 = scmp.lt.s32.totalorder %s27, 2
      // Predicated region
      $region29: #{tpu_custom_call.1} parent=5 // pred_check
        %p263 = pneg %p262
      $region30: #{tpu_custom_call.1} parent=5 // pred_check_branch
        %265 = sbr.rel (%p263) target = $region32
      $region31: #{tpu_custom_call.1} parent=5 // pred_region
        // Predicated region
        $region33: #{tpu_custom_call.1} parent=31 // pred_check
          %p266 = pneg %p47
        $region34: #{tpu_custom_call.1} parent=31 // pred_check_branch
          %268 = sbr.rel (%p266) target = $region36
        $region35: #{tpu_custom_call.1} parent=31 // pred_region
          %s269 = sand.u32 %s37, 1
          %s270 = scalar_lea.sflag [#allocation4], %s269
          %s271 = sand.u32 %s37, 1
          %s272 = smul.addr %s271, 8
          %s273 = scalar_lea.vmem [#allocation3], %s272
          %s275 = ssub.s32 128, 128
          %276 = vsyncadd %s270, %s275
          %s277 = smul.addr %s27, 128
          %s278 = scalar_lea.hbm %s0, %s277
          %s280 = sshll.u32 %s273, 4
          %s281 = int_to_ptr.vmem [resolvable:$true] %s280
          %283 = dma.hbm_to_vmem [thread:$0]  %s278, 128, %s281, %s270
        $region36: #{tpu_custom_call.1} parent=31 // pred_fallthru
          _
        // Predicated region
        $region37: #{tpu_custom_call.1} parent=31 // pred_check
          %p284 = pneg %p73
        $region38: #{tpu_custom_call.1} parent=31 // pred_check_branch
          %286 = sbr.rel (%p284) target = $region40
        $region39: #{tpu_custom_call.1} parent=31 // pred_region
          %s287 = sand.u32 %s27, 1
          %s288 = scalar_lea.sflag [#allocation7], %s287
          %s289 = sand.u32 %s63, 1
          %s290 = smul.addr %s289, 8
          %s291 = scalar_lea.vmem [#allocation6], %s290
          %s293 = ssub.s32 128, 128
          %294 = vsyncadd %s288, %s293
          %s295 = smul.addr %s27, 128
          %s296 = scalar_lea.hbm %s1, %s295
          %s298 = sshll.u32 %s291, 4
          %s299 = int_to_ptr.vmem [resolvable:$true] %s298
          %301 = dma.hbm_to_vmem [thread:$0]  %s296, 128, %s299, %s288
        $region40: #{tpu_custom_call.1} parent=31 // pred_fallthru
          _
      $region32: #{tpu_custom_call.1} parent=5 // pred_fallthru
        _
      %p302 = scmp.le.s32.totalorder 1, %s27
      %p303 = scmp.lt.s32.totalorder %s27, 3
      %p304 = pnand %p302, %p303
      %p305 = pneg %p304
      // Predicated region
      $region41: #{tpu_custom_call.1} parent=5 // pred_check
        _
      $region42: #{tpu_custom_call.1} parent=5 // pred_check_branch
        %307 = sbr.rel (%p304) target = $region44
      $region43: #{tpu_custom_call.1} parent=5 // pred_region
        %s308 = ssub.s32 %s27, 1
        %s309 = sand.u32 %s40, 1
        %s310 = scalar_lea.sflag [#allocation4], %s309
        %s311 = sand.u32 %s40, 1
        %s312 = smul.addr %s311, 8
        %s313 = scalar_lea.vmem [#allocation3], %s312
        // Predicated region
        $region45: #{tpu_custom_call.1} parent=43 // pred_check
          %p314 = pneg %p53
        $region46: #{tpu_custom_call.1} parent=43 // pred_check_branch
          %316 = sbr.rel (%p314) target = $region48
        $region47: #{tpu_custom_call.1} parent=43 // pred_region
          %317 = dma.done %s310, 128
        $region48: #{tpu_custom_call.1} parent=43 // pred_fallthru
          _
        %s318 = sand.u32 %s32, 1
        %s319 = scalar_lea.sflag [#allocation7], %s318
        %s320 = sand.u32 %s66, 1
        %s321 = smul.addr %s320, 8
        %s322 = scalar_lea.vmem [#allocation6], %s321
        // Predicated region
        $region49: #{tpu_custom_call.1} parent=43 // pred_check
          %p323 = pneg %p79
        $region50: #{tpu_custom_call.1} parent=43 // pred_check_branch
          %325 = sbr.rel (%p323) target = $region52
        $region51: #{tpu_custom_call.1} parent=43 // pred_region
          %326 = dma.done %s319, 128
        $region52: #{tpu_custom_call.1} parent=43 // pred_fallthru
          _
        // Predicated region
        $region53: #{tpu_custom_call.1} parent=43 // pred_check
          %p327 = pneg %p100
        $region54: #{tpu_custom_call.1} parent=43 // pred_check_branch
          %329 = sbr.rel (%p327) target = $region56
        $region55: #{tpu_custom_call.1} parent=43 // pred_region
          %330 = dma.done [#allocation7], 512
        $region56: #{tpu_custom_call.1} parent=43 // pred_fallthru
          _
        // Predicated region
        $region57: #{tpu_custom_call.1} parent=43 // pred_check
          %p331 = pneg %p142
        $region58: #{tpu_custom_call.1} parent=43 // pred_check_branch
          %333 = sbr.rel (%p331) target = $region60
        $region59: #{tpu_custom_call.1} parent=43 // pred_region
          %334 = dma.done [#allocation10], 512
        $region60: #{tpu_custom_call.1} parent=43 // pred_fallthru
          _
        %s335 = sand.u32 %s40, 1
        %s336 = scalar_lea.sflag [#allocation4], %s335
        %s337 = sand.u32 %s40, 1
        %s338 = smul.addr %s337, 8
        %s339 = scalar_lea.vmem [#allocation3], %s338
        %p340 = pneg %p53
        %p341 = pneg %p50
        %s342 = sand.u32 %s32, 1
        %s343 = scalar_lea.sflag [#allocation7], %s342
        %s344 = sand.u32 %s66, 1
        %s345 = smul.addr %s344, 8
        %s346 = scalar_lea.vmem [#allocation6], %s345
        %p347 = pneg %p79
        %p348 = pneg %p76
        %p349 = pneg %p100
        %p350 = pneg %p97
        %p351 = pneg %p121
        %p352 = pneg %p118
        %p353 = pneg %p142
        %p354 = pneg %p139
        %p355 = pneg %p163
        %p356 = pneg %p160
        %p357 = pneg %p189
        %p358 = pneg %p186
        %s359 = sand.u32 %s176, 1
        %s360 = scalar_lea.sflag [#allocation5], %s359
        %s361 = sand.u32 %s176, 1
        %s362 = smul.addr %s361, 8
        %s363 = scalar_lea.vmem [#allocation11], %s362
        %p364 = pneg %p215
        %p365 = pneg %p212
        %s366 = sand.u32 %s202, 1
        %s367 = scalar_lea.sflag [#allocation13], %s366
        %s368 = sand.u32 %s202, 1
        %s369 = smul.addr %s368, 8
        %s370 = scalar_lea.vmem [#allocation12], %s369
        %v371 = vld [vmem:[%s313] sm:$0xff]
        %v372 = vld [vmem:[#allocation8] sm:$0xff]
        %v373 = vld [vmem:[#allocation8 + $0x8] sm:$0xff]
        %v374 = vld [vmem:[#allocation8 + $0x10] sm:$0xff]
        %v375 = vld [vmem:[#allocation8 + $0x18] sm:$0xff]
        %v376 = vld [vmem:[%s3] sm:$0x1]
        %v378 = vlaneseq
        %v379 = vshrl.u32 %v378, 7
        %v380 = vsub.s32 0, %v379
        %v381 = vrot.slane %v376, %v380
        %vm383 = vcmask 261120
        %v385 = vsel %vm383, %v371, 0
        %387 = vmatprep.subr.mxu0 0.0
        %388 = vmatpush1.msra.mxu0 %v372
        %389 = vmatprep.subr.mxu0 0.0
        %390 = vmatpush1.msra.mxu0 %v373
        %391 = vmatprep.subr.mxu0 0.0
        %392 = vmatpush1.msra.mxu0 %v374
        %393 = vmatprep.subr.mxu0 0.0
        %394 = vmatpush1.msra.mxu0 %v375
        %395 = vmatprep.subr.mxu0 0.0
        %396 = vmatpush1.msra.mxu0 0.0
        %397 = vmatprep.subr.mxu0 0.0
        %398 = vmatpush1.msra.mxu0 0.0
        %399 = vmatprep.subr.mxu0 0.0
        %400 = vmatpush1.msra.mxu0 0.0
        %401 = vmatprep.subr.mxu0 0.0
        %402 = vmatpush1.msra.mxu0 0.0
        %403 = vmatprep.subr.mxu0 0.0
        %404 = vmatpush1.msra.mxu0 0.0
        %405 = vmatprep.subr.mxu0 0.0
        %406 = vmatpush1.msra.mxu0 0.0
        %407 = vmatprep.subr.mxu0 0.0
        %408 = vmatpush1.msra.mxu0 0.0
        %409 = vmatprep.subr.mxu0 0.0
        %410 = vmatpush1.msra.mxu0 0.0
        %411 = vmatprep.subr.mxu0 0.0
        %412 = vmatpush1.msra.mxu0 0.0
        %413 = vmatprep.subr.mxu0 0.0
        %414 = vmatpush1.msra.mxu0 0.0
        %415 = vmatprep.subr.mxu0 0.0
        %416 = vmatpush1.msra.mxu0 0.0
        %417 = vmatprep.subr.mxu0 0.0
        %418 = vmatpush1.msra.mxu0 0.0
        %419 = vmatprep.subr.mxu0 0.0
        %420 = vmatpush1.msra.mxu0 0.0
        %421 = vmatprep.subr.mxu0 0.0
        %422 = vmatpush1.msra.mxu0 0.0
        %423 = vmatprep.subr.mxu0 0.0
        %424 = vmatpush1.msra.mxu0 0.0
        %425 = vmatprep.subr.mxu0 0.0
        %426 = vmatpush1.msra.mxu0 0.0
        %427 = vmatprep.subr.mxu0 0.0
        %428 = vmatpush1.msra.mxu0 0.0
        %429 = vmatprep.subr.mxu0 0.0
        %430 = vmatpush1.msra.mxu0 0.0
        %431 = vmatprep.subr.mxu0 0.0
        %432 = vmatpush1.msra.mxu0 0.0
        %433 = vmatprep.subr.mxu0 0.0
        %434 = vmatpush1.msra.mxu0 0.0
        %435 = vmatprep.subr.mxu0 0.0
        %436 = vmatpush1.msra.mxu0 0.0
        %437 = vmatprep.subr.mxu0 0.0
        %438 = vmatpush1.msra.mxu0 0.0
        %439 = vmatprep.subr.mxu0 0.0
        %440 = vmatpush1.msra.mxu0 0.0
        %441 = vmatprep.subr.mxu0 0.0
        %442 = vmatpush1.msra.mxu0 0.0
        %443 = vmatprep.subr.mxu0 0.0
        %444 = vmatpush1.msra.mxu0 0.0
        %445 = vmatprep.subr.mxu0 0.0
        %446 = vmatpush1.msra.mxu0 0.0
        %447 = vmatprep.subr.mxu0 0.0
        %448 = vmatpush1.msra.mxu0 0.0
        %449 = vmatprep.subr.mxu0 0.0
        %450 = vmatpush1.msra.mxu0 0.0
        %451 = vmatprep.mubr.f32.mxu0 0.0
        %452 = vmatmul.mubr.f32.gmra.mrb[0].mxu0 %v385
        %v453 = vpop.f32.mrb[0].mxu0
        %v454 = vadd.f32 %v381, %v453
        %v455 = vpop.f32.mrb[0].mxu0
        %456 = vdwg.mxu0
        %v457 = vmax.f32 %v454, 0.0
        %458 = vst.msk [vmem:[#allocation2] sm:$0xff] %vm383, 0.0
        %459 = vst.msk [vmem:[#allocation2 + $0x8] sm:$0xff] %vm383, 0.0
        %460 = vst.msk [vmem:[#allocation2 + $0x10] sm:$0xff] %vm383, 0.0
        %461 = vst.msk [vmem:[#allocation2 + $0x18] sm:$0xff] %vm383, 0.0
        %462 = vst.msk [vmem:[#allocation2 + $0x20] sm:$0xff] %vm383, 0.0
        %463 = vst.msk [vmem:[#allocation2 + $0x28] sm:$0xff] %vm383, 0.0
        %464 = vst.msk [vmem:[#allocation2 + $0x30] sm:$0xff] %vm383, 0.0
        %465 = vst.msk [vmem:[#allocation2 + $0x38] sm:$0xff] %vm383, 0.0
        %466 = vst.msk [vmem:[#allocation2 + $0x40] sm:$0xff] %vm383, 0.0
        %467 = vst.msk [vmem:[#allocation2 + $0x48] sm:$0xff] %vm383, 0.0
        %468 = vst.msk [vmem:[#allocation2 + $0x50] sm:$0xff] %vm383, 0.0
        %469 = vst.msk [vmem:[#allocation2 + $0x58] sm:$0xff] %vm383, 0.0
        %470 = vst.msk [vmem:[#allocation2 + $0x60] sm:$0xff] %vm383, 0.0
        %471 = vst.msk [vmem:[#allocation2 + $0x68] sm:$0xff] %vm383, 0.0
        %472 = vst.msk [vmem:[#allocation2 + $0x70] sm:$0xff] %vm383, 0.0
        %473 = vst.msk [vmem:[#allocation2 + $0x78] sm:$0xff] %vm383, 0.0
        %v474 = vlaneseq
        %v475 = vand.u32 %v474, 127
        %vm476 = vcmp.lt.s32.totalorder %v475, 8
        %478 = vrot.lane.b32.xlu0 %v457, 64
        %v479 = vpop.permute.xlu0 %478
        %481 = vst.msk [vmem:[#allocation2] sm:$0xff] %vm383, %v479
        %v482 = vld [vmem:[#allocation2] sm:$0xff]
        %v483 = vld [vmem:[#allocation2 + $0x8] sm:$0xff]
        %v484 = vld [vmem:[#allocation2 + $0x10] sm:$0xff]
        %v485 = vld [vmem:[#allocation2 + $0x18] sm:$0xff]
        %v486 = vld [vmem:[#allocation2 + $0x20] sm:$0xff]
        %v487 = vld [vmem:[#allocation2 + $0x28] sm:$0xff]
        %v488 = vld [vmem:[#allocation2 + $0x30] sm:$0xff]
        %v489 = vld [vmem:[#allocation2 + $0x38] sm:$0xff]
        %v490 = vld [vmem:[#allocation2 + $0x40] sm:$0xff]
        %v491 = vld [vmem:[#allocation2 + $0x48] sm:$0xff]
        %v492 = vld [vmem:[#allocation2 + $0x50] sm:$0xff]
        %v493 = vld [vmem:[#allocation2 + $0x58] sm:$0xff]
        %v494 = vld [vmem:[#allocation2 + $0x60] sm:$0xff]
        %v495 = vld [vmem:[#allocation2 + $0x68] sm:$0xff]
        %v496 = vld [vmem:[#allocation2 + $0x70] sm:$0xff]
        %v497 = vld [vmem:[#allocation2 + $0x78] sm:$0xff]
        %498 = vrot.lane.b32.xlu0 %v457, 96
        %v499 = vpop.permute.xlu0 %498
        %v500 = vsel %vm383, %v499, 0
        %v503 = vsel %vm383, %v482, 0
        %v506 = vsel %vm383, %v483, 0
        %v509 = vsel %vm383, %v484, 0
        %v512 = vsel %vm383, %v485, 0
        %v515 = vsel %vm383, %v486, 0
        %v518 = vsel %vm383, %v487, 0
        %v521 = vsel %vm383, %v488, 0
        %v524 = vsel %vm383, %v489, 0
        %v527 = vsel %vm383, %v490, 0
        %v530 = vsel %vm383, %v491, 0
        %v533 = vsel %vm383, %v492, 0
        %v536 = vsel %vm383, %v493, 0
        %v539 = vsel %vm383, %v494, 0
        %v542 = vsel %vm383, %v495, 0
        %v545 = vsel %vm383, %v496, 0
        %v548 = vsel %vm383, %v497, 0
        %550 = vmatprep.subr.mxu0 0.0
        %551 = vmatpush1.xpose.msra.mxu0 %v503
        %552 = vmatprep.subr.mxu0 0.0
        %553 = vmatpush1.xpose.msra.mxu0 %v506
        %554 = vmatprep.subr.mxu0 0.0
        %555 = vmatpush1.xpose.msra.mxu0 %v509
        %556 = vmatprep.subr.mxu0 0.0
        %557 = vmatpush1.xpose.msra.mxu0 %v512
        %558 = vmatprep.subr.mxu0 0.0
        %559 = vmatpush1.xpose.msra.mxu0 %v515
        %560 = vmatprep.subr.mxu0 0.0
        %561 = vmatpush1.xpose.msra.mxu0 %v518
        %562 = vmatprep.subr.mxu0 0.0
        %563 = vmatpush1.xpose.msra.mxu0 %v521
        %564 = vmatprep.subr.mxu0 0.0
        %565 = vmatpush1.xpose.msra.mxu0 %v524
        %566 = vmatprep.subr.mxu0 0.0
        %567 = vmatpush1.xpose.msra.mxu0 %v527
        %568 = vmatprep.subr.mxu0 0.0
        %569 = vmatpush1.xpose.msra.mxu0 %v530
        %570 = vmatprep.subr.mxu0 0.0
        %571 = vmatpush1.xpose.msra.mxu0 %v533
        %572 = vmatprep.subr.mxu0 0.0
        %573 = vmatpush1.xpose.msra.mxu0 %v536
        %574 = vmatprep.subr.mxu0 0.0
        %575 = vmatpush1.xpose.msra.mxu0 %v539
        %576 = vmatprep.subr.mxu0 0.0
        %577 = vmatpush1.xpose.msra.mxu0 %v542
        %578 = vmatprep.subr.mxu0 0.0
        %579 = vmatpush1.xpose.msra.mxu0 %v545
        %580 = vmatprep.subr.mxu0 0.0
        %581 = vmatpush1.xpose.msra.mxu0 %v548
        %582 = vmatprep.subr.mxu0 0.0
        %583 = vmatpush1.xpose.msra.mxu0 0.0
        %584 = vmatprep.subr.mxu0 0.0
        %585 = vmatpush1.xpose.msra.mxu0 0.0
        %586 = vmatprep.subr.mxu0 0.0
        %587 = vmatpush1.xpose.msra.mxu0 0.0
        %588 = vmatprep.subr.mxu0 0.0
        %589 = vmatpush1.xpose.msra.mxu0 0.0
        %590 = vmatprep.subr.mxu0 0.0
        %591 = vmatpush1.xpose.msra.mxu0 0.0
        %592 = vmatprep.subr.mxu0 0.0
        %593 = vmatpush1.xpose.msra.mxu0 0.0
        %594 = vmatprep.subr.mxu0 0.0
        %595 = vmatpush1.xpose.msra.mxu0 0.0
        %596 = vmatprep.subr.mxu0 0.0
        %597 = vmatpush1.xpose.msra.mxu0 0.0
        %598 = vmatprep.subr.mxu0 0.0
        %599 = vmatpush1.xpose.msra.mxu0 0.0
        %600 = vmatprep.subr.mxu0 0.0
        %601 = vmatpush1.xpose.msra.mxu0 0.0
        %602 = vmatprep.subr.mxu0 0.0
        %603 = vmatpush1.xpose.msra.mxu0 0.0
        %604 = vmatprep.subr.mxu0 0.0
        %605 = vmatpush1.xpose.msra.mxu0 0.0
        %606 = vmatprep.subr.mxu0 0.0
        %607 = vmatpush1.xpose.msra.mxu0 0.0
        %608 = vmatprep.subr.mxu0 0.0
        %609 = vmatpush1.xpose.msra.mxu0 0.0
        %610 = vmatprep.subr.mxu0 0.0
        %611 = vmatpush1.xpose.msra.mxu0 0.0
        %612 = vmatprep.subr.mxu0 0.0
        %613 = vmatpush1.xpose.msra.mxu0 0.0
        %614 = vmatprep.mubr.f32.mxu0 0.0
        %615 = vmatmul.mubr.f32.gmra.mrb[0].mxu0 %v500
        %v616 = vpop.f32.mrb[0].mxu0
        %v617 = vadd.f32 0.0, %v616
        %v618 = vpop.f32.mrb[0].mxu0
        %619 = vdwg.mxu0
        %v620 = vld [vmem:[%s322] sm:$0xff]
        %vm621 = vcmp.ne.f32.partialorder %v620, 0.0
        %v622 = vsel %vm621, %v617, -1000.0
        %623 = vmax.xlane.f32.xlu0 %v622
        %v624 = vpop.xlane.xlu0 %623
        %v625 = vsub.f32 %v622, %v624
        %v626 = vmul.f32 %v625, 1.442695
        %v627 = vpow.pop %v626
        %v628 = vsel %vm476, %v627, 0.0
        %629 = vadd.xlane.f32.xlu0 %v628
        %v630 = vpop.xlane.xlu0 %629
        %v631 = vrcp.pop %v630
        %v632 = vmul.f32 %v628, %v631
        %633 = vst [vmem:[%s370] sm:$0xff] %v632
        %vm634 = vcmask 64512
        %v636 = vsel %vm634, %v632, 0
        %638 = vmatprep.subr.mxu0 0.0
        %639 = vmatpush1.msra.mxu0 %v457
        %640 = vmatprep.subr.mxu0 0.0
        %641 = vmatpush1.msra.mxu0 0.0
        %642 = vmatprep.subr.mxu0 0.0
        %643 = vmatpush1.msra.mxu0 0.0
        %644 = vmatprep.subr.mxu0 0.0
        %645 = vmatpush1.msra.mxu0 0.0
        %646 = vmatprep.subr.mxu0 0.0
        %647 = vmatpush1.msra.mxu0 0.0
        %648 = vmatprep.subr.mxu0 0.0
        %649 = vmatpush1.msra.mxu0 0.0
        %650 = vmatprep.subr.mxu0 0.0
        %651 = vmatpush1.msra.mxu0 0.0
        %652 = vmatprep.subr.mxu0 0.0
        %653 = vmatpush1.msra.mxu0 0.0
        %654 = vmatprep.subr.mxu0 0.0
        %655 = vmatpush1.msra.mxu0 0.0
        %656 = vmatprep.subr.mxu0 0.0
        %657 = vmatpush1.msra.mxu0 0.0
        %658 = vmatprep.subr.mxu0 0.0
        %659 = vmatpush1.msra.mxu0 0.0
        %660 = vmatprep.subr.mxu0 0.0
        %661 = vmatpush1.msra.mxu0 0.0
        %662 = vmatprep.subr.mxu0 0.0
        %663 = vmatpush1.msra.mxu0 0.0
        %664 = vmatprep.subr.mxu0 0.0
        %665 = vmatpush1.msra.mxu0 0.0
        %666 = vmatprep.subr.mxu0 0.0
        %667 = vmatpush1.msra.mxu0 0.0
        %668 = vmatprep.subr.mxu0 0.0
        %669 = vmatpush1.msra.mxu0 0.0
        %670 = vmatprep.subr.mxu0 0.0
        %671 = vmatpush1.msra.mxu0 0.0
        %672 = vmatprep.subr.mxu0 0.0
        %673 = vmatpush1.msra.mxu0 0.0
        %674 = vmatprep.subr.mxu0 0.0
        %675 = vmatpush1.msra.mxu0 0.0
        %676 = vmatprep.subr.mxu0 0.0
        %677 = vmatpush1.msra.mxu0 0.0
        %678 = vmatprep.subr.mxu0 0.0
        %679 = vmatpush1.msra.mxu0 0.0
        %680 = vmatprep.subr.mxu0 0.0
        %681 = vmatpush1.msra.mxu0 0.0
        %682 = vmatprep.subr.mxu0 0.0
        %683 = vmatpush1.msra.mxu0 0.0
        %684 = vmatprep.subr.mxu0 0.0
        %685 = vmatpush1.msra.mxu0 0.0
        %686 = vmatprep.subr.mxu0 0.0
        %687 = vmatpush1.msra.mxu0 0.0
        %688 = vmatprep.subr.mxu0 0.0
        %689 = vmatpush1.msra.mxu0 0.0
        %690 = vmatprep.subr.mxu0 0.0
        %691 = vmatpush1.msra.mxu0 0.0
        %692 = vmatprep.subr.mxu0 0.0
        %693 = vmatpush1.msra.mxu0 0.0
        %694 = vmatprep.subr.mxu0 0.0
        %695 = vmatpush1.msra.mxu0 0.0
        %696 = vmatprep.subr.mxu0 0.0
        %697 = vmatpush1.msra.mxu0 0.0
        %698 = vmatprep.subr.mxu0 0.0
        %699 = vmatpush1.msra.mxu0 0.0
        %700 = vmatprep.subr.mxu0 0.0
        %701 = vmatpush1.msra.mxu0 0.0
        %702 = vmatprep.mubr.f32.mxu0 0.0
        %703 = vmatmul.mubr.f32.gmra.mrb[0].mxu0 %v636
        %v704 = vpop.f32.mrb[0].mxu0
        %v705 = vadd.f32 0.0, %v704
        %v706 = vpop.f32.mrb[0].mxu0
        %707 = vdwg.mxu0
        %v708 = vld [vmem:[#allocation9] sm:$0xff]
        %v709 = vld [vmem:[#allocation9 + $0x8] sm:$0xff]
        %v710 = vld [vmem:[#allocation9 + $0x10] sm:$0xff]
        %v711 = vld [vmem:[#allocation9 + $0x18] sm:$0xff]
        %v712 = vld [vmem:[%s5] sm:$0x1]
        %v714 = vlaneseq
        %v715 = vshrl.u32 %v714, 7
        %v716 = vsub.s32 0, %v715
        %v717 = vrot.slane %v712, %v716
        %v720 = vsel %vm383, %v705, 0
        %722 = vmatprep.subr.mxu0 0.0
        %723 = vmatpush1.msra.mxu0 %v708
        %724 = vmatprep.subr.mxu0 0.0
        %725 = vmatpush1.msra.mxu0 %v709
        %726 = vmatprep.subr.mxu0 0.0
        %727 = vmatpush1.msra.mxu0 %v710
        %728 = vmatprep.subr.mxu0 0.0
        %729 = vmatpush1.msra.mxu0 %v711
        %730 = vmatprep.subr.mxu0 0.0
        %731 = vmatpush1.msra.mxu0 0.0
        %732 = vmatprep.subr.mxu0 0.0
        %733 = vmatpush1.msra.mxu0 0.0
        %734 = vmatprep.subr.mxu0 0.0
        %735 = vmatpush1.msra.mxu0 0.0
        %736 = vmatprep.subr.mxu0 0.0
        %737 = vmatpush1.msra.mxu0 0.0
        %738 = vmatprep.subr.mxu0 0.0
        %739 = vmatpush1.msra.mxu0 0.0
        %740 = vmatprep.subr.mxu0 0.0
        %741 = vmatpush1.msra.mxu0 0.0
        %742 = vmatprep.subr.mxu0 0.0
        %743 = vmatpush1.msra.mxu0 0.0
        %744 = vmatprep.subr.mxu0 0.0
        %745 = vmatpush1.msra.mxu0 0.0
        %746 = vmatprep.subr.mxu0 0.0
        %747 = vmatpush1.msra.mxu0 0.0
        %748 = vmatprep.subr.mxu0 0.0
        %749 = vmatpush1.msra.mxu0 0.0
        %750 = vmatprep.subr.mxu0 0.0
        %751 = vmatpush1.msra.mxu0 0.0
        %752 = vmatprep.subr.mxu0 0.0
        %753 = vmatpush1.msra.mxu0 0.0
        %754 = vmatprep.subr.mxu0 0.0
        %755 = vmatpush1.msra.mxu0 0.0
        %756 = vmatprep.subr.mxu0 0.0
        %757 = vmatpush1.msra.mxu0 0.0
        %758 = vmatprep.subr.mxu0 0.0
        %759 = vmatpush1.msra.mxu0 0.0
        %760 = vmatprep.subr.mxu0 0.0
        %761 = vmatpush1.msra.mxu0 0.0
        %762 = vmatprep.subr.mxu0 0.0
        %763 = vmatpush1.msra.mxu0 0.0
        %764 = vmatprep.subr.mxu0 0.0
        %765 = vmatpush1.msra.mxu0 0.0
        %766 = vmatprep.subr.mxu0 0.0
        %767 = vmatpush1.msra.mxu0 0.0
        %768 = vmatprep.subr.mxu0 0.0
        %769 = vmatpush1.msra.mxu0 0.0
        %770 = vmatprep.subr.mxu0 0.0
        %771 = vmatpush1.msra.mxu0 0.0
        %772 = vmatprep.subr.mxu0 0.0
        %773 = vmatpush1.msra.mxu0 0.0
        %774 = vmatprep.subr.mxu0 0.0
        %775 = vmatpush1.msra.mxu0 0.0
        %776 = vmatprep.subr.mxu0 0.0
        %777 = vmatpush1.msra.mxu0 0.0
        %778 = vmatprep.subr.mxu0 0.0
        %779 = vmatpush1.msra.mxu0 0.0
        %780 = vmatprep.subr.mxu0 0.0
        %781 = vmatpush1.msra.mxu0 0.0
        %782 = vmatprep.subr.mxu0 0.0
        %783 = vmatpush1.msra.mxu0 0.0
        %784 = vmatprep.subr.mxu0 0.0
        %785 = vmatpush1.msra.mxu0 0.0
        %786 = vmatprep.mubr.f32.mxu0 0.0
        %787 = vmatmul.mubr.f32.gmra.mrb[0].mxu0 %v720
        %v788 = vpop.f32.mrb[0].mxu0
        %v789 = vadd.f32 %v717, %v788
        %v790 = vpop.f32.mrb[0].mxu0
        %791 = vdwg.mxu0
        %v792 = vmax.f32 %v789, 0.0
        %793 = vst [vmem:[%s363] sm:$0xff] %v792
        %s794 = sand.u32 %s176, 1
        %s795 = scalar_lea.sflag [#allocation5], %s794
        %s796 = sand.u32 %s176, 1
        %s797 = smul.addr %s796, 8
        %s798 = scalar_lea.vmem [#allocation11], %s797
        %s799 = sand.u32 %s202, 1
        %s800 = scalar_lea.sflag [#allocation13], %s799
        %s801 = sand.u32 %s202, 1
        %s802 = smul.addr %s801, 8
        %s803 = scalar_lea.vmem [#allocation12], %s802
        // Predicated region
        $region61: #{tpu_custom_call.1} parent=43 // pred_check
          %p804 = pneg %p186
        $region62: #{tpu_custom_call.1} parent=43 // pred_check_branch
          %806 = sbr.rel (%p804) target = $region64
        $region63: #{tpu_custom_call.1} parent=43 // pred_region
          %s808 = ssub.s32 128, 128
          %809 = vsyncadd %s795, %s808
          %s810 = smul.addr %s32, 128
          %s811 = scalar_lea.hbm %s6, %s810
          %s813 = sshll.u32 %s798, 4
          %s814 = int_to_ptr.vmem [resolvable:$true] %s813
          %816 = dma.vmem_to_hbm [thread:$0]  %s814, 128, %s811, %s795
        $region64: #{tpu_custom_call.1} parent=43 // pred_fallthru
          _
        // Predicated region
        $region65: #{tpu_custom_call.1} parent=43 // pred_check
          %p817 = pneg %p212
        $region66: #{tpu_custom_call.1} parent=43 // pred_check_branch
          %819 = sbr.rel (%p817) target = $region68
        $region67: #{tpu_custom_call.1} parent=43 // pred_region
          %s821 = ssub.s32 128, 128
          %822 = vsyncadd %s800, %s821
          %s823 = smul.addr %s32, 128
          %s824 = scalar_lea.hbm %s7, %s823
          %s826 = sshll.u32 %s803, 4
          %s827 = int_to_ptr.vmem [resolvable:$true] %s826
          %829 = dma.vmem_to_hbm [thread:$0]  %s827, 128, %s824, %s800
        $region68: #{tpu_custom_call.1} parent=43 // pred_fallthru
          _
      $region44: #{tpu_custom_call.1} parent=5 // pred_fallthru
        _
      %p830 = scmp.le.s32.totalorder 2, %s27
      // Predicated region
      $region69: #{tpu_custom_call.1} parent=5 // pred_check
        %p831 = pneg %p830
      $region70: #{tpu_custom_call.1} parent=5 // pred_check_branch
        %833 = sbr.rel (%p831) target = $region72
      $region71: #{tpu_custom_call.1} parent=5 // pred_region
        %s834 = ssub.s32 %s27, 2
        // Predicated region
        $region73: #{tpu_custom_call.1} parent=71 // pred_check
          %p835 = pneg %p192
        $region74: #{tpu_custom_call.1} parent=71 // pred_check_branch
          %837 = sbr.rel (%p835) target = $region76
        $region75: #{tpu_custom_call.1} parent=71 // pred_region
          %s838 = sand.u32 %s177, 1
          %s839 = scalar_lea.sflag [#allocation5], %s838
          %s840 = sand.u32 %s177, 1
          %s841 = smul.addr %s840, 8
          %s842 = scalar_lea.vmem [#allocation11], %s841
          %843 = dma.done %s839, 128
        $region76: #{tpu_custom_call.1} parent=71 // pred_fallthru
          _
        // Predicated region
        $region77: #{tpu_custom_call.1} parent=71 // pred_check
          %p844 = pneg %p218
        $region78: #{tpu_custom_call.1} parent=71 // pred_check_branch
          %846 = sbr.rel (%p844) target = $region80
        $region79: #{tpu_custom_call.1} parent=71 // pred_region
          %s847 = sand.u32 %s203, 1
          %s848 = scalar_lea.sflag [#allocation13], %s847
          %s849 = sand.u32 %s203, 1
          %s850 = smul.addr %s849, 8
          %s851 = scalar_lea.vmem [#allocation12], %s850
          %852 = dma.done %s848, 128
        $region80: #{tpu_custom_call.1} parent=71 // pred_fallthru
          _
      $region72: #{tpu_custom_call.1} parent=5 // pred_fallthru
        _
    $region6: #{tpu_custom_call.1} parent=1 // loop_footer
      %s31 = sadd.s32 1, %s27
    $region7: #{tpu_custom_call.1} parent=1 // loop_footer_branch
      %26 = sbr.rel target = $region3
    $region8: #{tpu_custom_call.1} parent=1 // loop_exit
      _
    %853 = vsyncpa [#allocation4], 1
    %s854 = scalar_lea.sflag [#allocation4], 1
    %855 = vsyncpa %s854, 1
    %856 = vsyncpa [#allocation7], 1
    %s857 = scalar_lea.sflag [#allocation7], 1
    %858 = vsyncpa %s857, 1
    %859 = vsyncpa [#allocation10], 1
    %860 = vsyncpa [#allocation5], 1
    %s861 = scalar_lea.sflag [#allocation5], 1
    %862 = vsyncpa %s861, 1
    %863 = vsyncpa [#allocation13], 1
    %s864 = scalar_lea.sflag [#allocation13], 1
    %865 = vsyncpa %s864, 1

</llo_original>
